<compile_context>
chip_gen: v6e
topology: v6e:2x2x1
jax: 0.10.0
libtpu: 0.0.40
codegen_flags: <defaults>
</compile_context>

<pallas_src>
import functools
import math

import jax
import jax.numpy as jnp
from jax.experimental import pallas as pl
from jax.experimental.pallas import tpu as pltpu


def _round_up(x, m):
    return -(-x // m) * m


def _vmem_capacity_bytes():
    try:
        info = pltpu.get_tpu_info()
        for attr in ("vmem_capacity_bytes", "vmem_bytes", "vmem_size_bytes"):
            v = getattr(info, attr, None)
            if v:
                return int(v)
    except Exception:
        pass
    return 64 * 1024 * 1024  # conservative fallback: v7x per-TensorCore VMEM


def _num_tensorcores():
    try:
        info = pltpu.get_tpu_info()
        for attr in ("num_cores", "num_tensorcores", "tensor_cores_per_chip", "cores_per_chip"):
            v = getattr(info, attr, None)
            if v:
                return int(v)
    except Exception:
        pass
    return 1  # v5e / v6e: one TensorCore per chip (megacore split is a perf-only decision)


def _resident_gather_kernel(ids_ref, w_ref, o_ref, *, tk, k_blocks):
    # ids_ref: (1, g, rows) int32 -- lane-dense token ids, g lane-groups per output row
    # w_ref:   (k_pad, d)         -- WHOLE codebook, VMEM-resident (constant block index)
    # o_ref:   (rows, g*d)        -- lane-packed output block
    g = ids_ref.shape[1]
    rows = o_ref.shape[0]

    ids = [ids_ref[:, c, :] for c in range(g)]                 # g x (1, rows), loaded once
    # K-tile-local codes; the t*tk offset is applied to the tiny (1, rows) ids instead.
    codes = jax.lax.broadcasted_iota(jnp.int32, (tk, rows), 0)

    acc = None
    for t in range(k_blocks):                                   # static unroll (k_blocks <= 32)
        base = t * tk
        w_tile = w_ref[...] if k_blocks == 1 else w_ref[pl.ds(base, tk), :]
        chunks = []
        for c in range(g):
            ids_c = ids[c] if base == 0 else ids[c] - base
            onehot = (codes == ids_c).astype(w_tile.dtype)      # (tk, rows), exact 0/1
            # transposed-LHS matmul on the MXU: onehot^T @ w_tile -> (rows, d)
            chunks.append(jax.lax.dot_general(
                onehot, w_tile,
                dimension_numbers=(((0,), (0,)), ((), ())),
                preferred_element_type=jnp.float32))
        packed = chunks[0] if g == 1 else jnp.concatenate(chunks, axis=-1)
        acc = packed if acc is None else acc + packed           # K tiles are disjoint -> exact
    o_ref[...] = acc.astype(o_ref.dtype)


def _tiled_gather_kernel(ids_ref, w_ref, o_ref):
    # ids_ref: (1, g, rows) int32; w_ref: (tk, d) K-tile; o_ref: (rows, g*d), resident over kk.
    kk = pl.program_id(1)
    g = ids_ref.shape[1]
    rows = o_ref.shape[0]
    tk = w_ref.shape[0]

    w = w_ref[...]
    base = kk * tk                                              # offset applied to ids, not iota
    codes = jax.lax.broadcasted_iota(jnp.int32, (tk, rows), 0)
    chunks = []
    for c in range(g):
        ids_c = ids_ref[:, c, :] - base                         # (1, rows) shift -- cheap
        onehot = (codes == ids_c).astype(w.dtype)               # (tk, rows), exact 0/1
        chunks.append(jax.lax.dot_general(
            onehot, w,
            dimension_numbers=(((0,), (0,)), ((), ())),
            preferred_element_type=jnp.float32))
    packed = (chunks[0] if g == 1 else jnp.concatenate(chunks, axis=-1)).astype(o_ref.dtype)

    @pl.when(kk == 0)
    def _store():                                               # first K tile: plain store, no RMW
        o_ref[...] = packed

    @pl.when(kk != 0)
    def _accumulate():                                          # later tiles: disjoint adds, exact
        o_ref[...] += packed


def embedding_ema_forward(embed_id, weight, *, tn=None, _force_tiled=False, _tk=None):
    """F.embedding(embed_id, weight) via Pallas. embed_id: any int shape, weight: (K, D)."""
    k, d = weight.shape
    wdtype = weight.dtype
    itemsize = jnp.dtype(wdtype).itemsize
    idx_shape = embed_id.shape
    ids_flat = embed_id.reshape(-1).astype(jnp.int32)
    n = int(ids_flat.shape[0])
    if n == 0:
        return jnp.zeros((*idx_shape, d), wdtype)

    # ---- output lane packing: pack g tokens per output row so the last dim is k*128 lanes ----
    lcm_d = math.lcm(d, 128)
    g = lcm_d // d if lcm_d <= 1024 else 1
    unit = 128 * g                       # block granularity in tokens (rows multiple of 128)

    # ---- per-generation budgets ----
    vmem_cap = _vmem_capacity_bytes()                    # 128 MiB v5e/v6e, 64 MiB v7x
    num_cores = _num_tensorcores()                       # 2 on v7x megacore, else 1
    resident_budget = min(vmem_cap // 4, 24 * 1024 * 1024)
    ONEHOT_BUDGET = 4 * 1024 * 1024                      # one live (tk, rows) f32 one-hot
    OUT_BLOCK_BUDGET = 4 * 1024 * 1024                   # per output-block buffer
    TK_MAX = 1024

    cb_bytes = k * d * itemsize
    kb_resident = 1 if k <= TK_MAX else _round_up(k, TK_MAX) // TK_MAX
    resident = (not _force_tiled) and cb_bytes <= resident_budget and kb_resident <= 32

    # ---- N tile: big (amortize ~0.35us/step; cut codebook re-streams when K stays tiled) ----
    tn_req = tn if tn is not None else (2048 if resident else 8192)
    tn_cap_out = max(unit, (OUT_BLOCK_BUDGET // (d * itemsize)) // unit * unit)
    n_units = -(-n // unit)
    tn_eff = min(_round_up(tn_req, unit), tn_cap_out, n_units * unit)
    u_per_block = max(1, tn_eff // unit)
    if num_cores > 1 and n_units >= num_cores:           # v7x only: keep >= 1 block per TC
        u_per_block = min(u_per_block, -(-n_units // num_cores))
    tn_eff = u_per_block * unit
    rows = tn_eff // g
    n_blocks = -(-n_units // u_per_block)
    n_pad = n_blocks * tn_eff

    if n_pad != n:
        ids_flat = jnp.pad(ids_flat, (0, n_pad - n))     # padded ids gather row 0, sliced off
    # interleave so lane-group c of local row r holds token r*g + c (row-major unpack is free)
    ids_blocks = ids_flat.reshape(n_blocks, rows, g).transpose(0, 2, 1)   # (nb, g, rows)

    if resident:
        tk = k if k <= TK_MAX else TK_MAX
        k_pad = k if k <= TK_MAX else _round_up(k, TK_MAX)
        kb = kb_resident
        w_in = weight if k_pad == k else jnp.pad(weight, ((0, k_pad - k), (0, 0)))
        kernel = functools.partial(_resident_gather_kernel, tk=tk, k_blocks=kb)
        grid = (n_blocks,)
        in_specs = [
            pl.BlockSpec((1, g, rows), lambda i: (i, 0, 0)),
            # whole codebook, constant block index, single-buffered: fetched from HBM once
            pl.BlockSpec((k_pad, d), lambda i: (0, 0), pipeline_mode=pl.Buffered(1)),
        ]
        out_specs = pl.BlockSpec((rows, g * d), lambda i: (i, 0))
        dims = ("parallel",)
        w_vmem_bytes = k_pad * d * itemsize
    else:
        if _tk is not None:                               # testing hook
            tk = _tk
        else:
            tk = ONEHOT_BUDGET // (rows * 4)
            tk = max(128, min(TK_MAX, (tk // 128) * 128))
        k_pad = _round_up(k, tk)
        kb = k_pad // tk
        w_in = weight if k_pad == k else jnp.pad(weight, ((0, k_pad - k), (0, 0)))
        kernel = _tiled_gather_kernel
        grid = (n_blocks, kb)                             # reduction axis (K) last
        in_specs = [
            pl.BlockSpec((1, g, rows), lambda i, kk: (i, 0, 0)),
            pl.BlockSpec((tk, d), lambda i, kk: (kk, 0)),
        ]
        out_specs = pl.BlockSpec((rows, g * d), lambda i, kk: (i, 0))
        dims = ("parallel", "arbitrary")
        w_vmem_bytes = 2 * tk * d * itemsize              # double-buffered K tiles

    # ---- VMEM limit derived from the actual block bytes, capped below physical capacity ----
    out_block_bytes = rows * g * d * itemsize
    need = (w_vmem_bytes
            + 2 * out_block_bytes                         # double-buffered output block
            + 2 * g * rows * 4                            # ids blocks
            + tk * rows * 4                               # one live one-hot tile
            + 2 * rows * g * d * 4)                       # f32 matmul results / accumulator
    vmem_limit = max(32 * 1024 * 1024, min(2 * need, (vmem_cap * 3) // 4))
    vmem_limit = max(vmem_limit, need + (2 << 20))

    out_packed = pl.pallas_call(
        kernel,
        out_shape=jax.ShapeDtypeStruct((n_pad // g, g * d), wdtype),
        grid_spec=pltpu.PrefetchScalarGridSpec(
            num_scalar_prefetch=0,
            grid=grid,
            in_specs=in_specs,
            out_specs=out_specs,
        ),
        compiler_params=pltpu.CompilerParams(
            dimension_semantics=dims,
            vmem_limit_bytes=int(vmem_limit),
        ),
    )(ids_blocks, w_in)

    out_flat = out_packed.reshape(n_pad, d)[:n]           # row-major unpack (free) + drop padding
    return out_flat.reshape(*idx_shape, d)


# TODO(synk): cluster_size_ema_update / embed_avg_ema_update / weight_update are training-time EMA
# buffer updates (not part of forward); they remain plain JAX elementwise ops if ever needed.
# TODO(synk): if profiling shows MXU (vmatmul) saturation at large K / f32 weights / D<=64, batch
# several codebooks/heads to an effective D>=128 or emit the transposed (d, rows) product instead.


if __name__ == "__main__":
    num_tokens = 16
    codebook_dim = 32
    B, H, W = 2, 16, 16

    key = jax.random.PRNGKey(0)
    k_w, k_id, k_id2, k_w2, k_id3 = jax.random.split(key, 5)

    # Deterministic init, matching torch.randn(num_tokens, codebook_dim)
    weight = jax.random.normal(k_w, (num_tokens, codebook_dim), dtype=jnp.float32)
    embed_id = jax.random.randint(k_id, (B, H, W), 0, num_tokens, dtype=jnp.int32)

    out = jax.block_until_ready(embedding_ema_forward(embed_id, weight))
    ref = weight[embed_id]
    assert out.shape == (B, H, W, codebook_dim)
    assert out.dtype == jnp.float32
    assert bool(jnp.array_equal(out, ref))

    # ragged N (exercises padding + slicing of the tail tokens)
    embed_id2 = jax.random.randint(k_id2, (3, 5, 7), 0, num_tokens, dtype=jnp.int32)
    out2 = jax.block_until_ready(embedding_ema_forward(embed_id2, weight))
    assert bool(jnp.array_equal(out2, weight[embed_id2]))

    # bf16 codebook path (exact: one-hot x bf16 rows, f32 accumulation, cast back)
    w_bf16 = weight.astype(jnp.bfloat16)
    out_bf = jax.block_until_ready(embedding_ema_forward(embed_id, w_bf16))
    assert out_bf.dtype == jnp.bfloat16
    assert bool(jnp.array_equal(out_bf, w_bf16[embed_id]))

    # K-tiled (non-resident) path with accumulation across several K tiles
    weight2 = jax.random.normal(k_w2, (300, codebook_dim), dtype=jnp.float32)
    embed_id3 = jax.random.randint(k_id3, (2, 8, 8), 0, 300, dtype=jnp.int32)
    out3 = jax.block_until_ready(
        embedding_ema_forward(embed_id3, weight2, _force_tiled=True, _tk=128))
    assert bool(jnp.array_equal(out3, weight2[embed_id3]))

    print("KERNEL_OK")
</pallas_src>

<mosaic_0001>
module attributes {stable_mosaic.version = 11 : i64} {
  func.func @_resident_gather_kernel(%arg0: i32, %arg1: memref<1x4x128xi32, #tpu.memory_space<vmem>>, %arg2: memref<16x32xf32, #tpu.memory_space<vmem>>, %arg3: memref<128x128xf32, #tpu.memory_space<vmem>>) attributes {dimension_semantics = [#tpu.dimension_semantics<parallel>], iteration_bounds = array<i64: 1>, scalar_prefetch = 0 : i64, scratch_operands = 0 : i64, tpu.core_type = #tpu.core_type<tc>, window_params = [{transform_indices = @transform_0, window_bounds = array<i64: 1, 4, 128>}, {pipeline_mode = #tpu.pipeline_mode<synchronous>, transform_indices = @transform_1, window_bounds = array<i64: 16, 32>}, {transform_indices = @transform_2, window_bounds = array<i64: 128, 128>}]} {
    %c0 = arith.constant 0 : index
    %c0_0 = arith.constant 0 : index
    %c0_1 = arith.constant 0 : index
    %0 = vector.load %arg1[%c0, %c0_0, %c0_1] : memref<1x4x128xi32, #tpu.memory_space<vmem>>, vector<1x1x128xi32>
    %1 = vector.shape_cast %0 : vector<1x1x128xi32> to vector<1x128xi32>
    %c0_2 = arith.constant 0 : index
    %c1 = arith.constant 1 : index
    %c0_3 = arith.constant 0 : index
    %2 = vector.load %arg1[%c0_2, %c1, %c0_3] : memref<1x4x128xi32, #tpu.memory_space<vmem>>, vector<1x1x128xi32>
    %3 = vector.shape_cast %2 : vector<1x1x128xi32> to vector<1x128xi32>
    %c0_4 = arith.constant 0 : index
    %c2 = arith.constant 2 : index
    %c0_5 = arith.constant 0 : index
    %4 = vector.load %arg1[%c0_4, %c2, %c0_5] : memref<1x4x128xi32, #tpu.memory_space<vmem>>, vector<1x1x128xi32>
    %5 = vector.shape_cast %4 : vector<1x1x128xi32> to vector<1x128xi32>
    %c0_6 = arith.constant 0 : index
    %c3 = arith.constant 3 : index
    %c0_7 = arith.constant 0 : index
    %6 = vector.load %arg1[%c0_6, %c3, %c0_7] : memref<1x4x128xi32, #tpu.memory_space<vmem>>, vector<1x1x128xi32>
    %7 = vector.shape_cast %6 : vector<1x1x128xi32> to vector<1x128xi32>
    %8 = tpu.iota {dimensions = array<i32: 0>} : vector<16x128xi32>
    %c0_8 = arith.constant 0 : index
    %c0_9 = arith.constant 0 : index
    %9 = vector.load %arg2[%c0_8, %c0_9] : memref<16x32xf32, #tpu.memory_space<vmem>>, vector<16x32xf32>
    %10 = vector.broadcast %1 : vector<1x128xi32> to vector<16x128xi32>
    %11 = arith.cmpi eq, %8, %10 : vector<16x128xi32>
    %12 = arith.extui %11 : vector<16x128xi1> to vector<16x128xi32>
    %13 = arith.sitofp %12 : vector<16x128xi32> to vector<16x128xf32>
    %cst = arith.constant dense<0.000000e+00> : vector<128x32xf32>
    %14 = tpu.matmul %13, %9, %cst {dimension_numbers = #tpu.dot_dimension_numbers<[0], [0], [1], [1], [0, 1, 1, 1], [], []>} : vector<16x128xf32>, vector<16x32xf32>, vector<128x32xf32> -> vector<128x32xf32>
    %15 = vector.broadcast %3 : vector<1x128xi32> to vector<16x128xi32>
    %16 = arith.cmpi eq, %8, %15 : vector<16x128xi32>
    %17 = arith.extui %16 : vector<16x128xi1> to vector<16x128xi32>
    %18 = arith.sitofp %17 : vector<16x128xi32> to vector<16x128xf32>
    %cst_10 = arith.constant dense<0.000000e+00> : vector<128x32xf32>
    %19 = tpu.matmul %18, %9, %cst_10 {dimension_numbers = #tpu.dot_dimension_numbers<[0], [0], [1], [1], [0, 1, 1, 1], [], []>} : vector<16x128xf32>, vector<16x32xf32>, vector<128x32xf32> -> vector<128x32xf32>
    %20 = vector.broadcast %5 : vector<1x128xi32> to vector<16x128xi32>
    %21 = arith.cmpi eq, %8, %20 : vector<16x128xi32>
    %22 = arith.extui %21 : vector<16x128xi1> to vector<16x128xi32>
    %23 = arith.sitofp %22 : vector<16x128xi32> to vector<16x128xf32>
    %cst_11 = arith.constant dense<0.000000e+00> : vector<128x32xf32>
    %24 = tpu.matmul %23, %9, %cst_11 {dimension_numbers = #tpu.dot_dimension_numbers<[0], [0], [1], [1], [0, 1, 1, 1], [], []>} : vector<16x128xf32>, vector<16x32xf32>, vector<128x32xf32> -> vector<128x32xf32>
    %25 = vector.broadcast %7 : vector<1x128xi32> to vector<16x128xi32>
    %26 = arith.cmpi eq, %8, %25 : vector<16x128xi32>
    %27 = arith.extui %26 : vector<16x128xi1> to vector<16x128xi32>
    %28 = arith.sitofp %27 : vector<16x128xi32> to vector<16x128xf32>
    %cst_12 = arith.constant dense<0.000000e+00> : vector<128x32xf32>
    %29 = tpu.matmul %28, %9, %cst_12 {dimension_numbers = #tpu.dot_dimension_numbers<[0], [0], [1], [1], [0, 1, 1, 1], [], []>} : vector<16x128xf32>, vector<16x32xf32>, vector<128x32xf32> -> vector<128x32xf32>
    %30 = tpu.concatenate %14, %19, %24, %29 in 1 : vector<128x32xf32>, vector<128x32xf32>, vector<128x32xf32>, vector<128x32xf32> -> vector<128x128xf32>
    %c0_13 = arith.constant 0 : index
    %c0_14 = arith.constant 0 : index
    %31 = vector.load %arg3[%c0_13, %c0_14] : memref<128x128xf32, #tpu.memory_space<vmem>>, vector<128x128xf32>
    tpu.vector_store %arg3[%c0_13, %c0_14], %30 {strides = array<i32>} : memref<128x128xf32, #tpu.memory_space<vmem>>, vector<128x128xf32>,
    return
  }
  func.func @transform_0(%arg0: i32) -> (i32, i32, i32) {
    %c0_i32 = arith.constant 0 : i32
    %c0_i32_0 = arith.constant 0 : i32
    %c0_i32_1 = arith.constant 0 : i32
    return %arg0, %c0_i32, %c0_i32_0 : i32, i32, i32
  }
  func.func @transform_1(%arg0: i32) -> (i32, i32) {
    %c0_i32 = arith.constant 0 : i32
    %c0_i32_0 = arith.constant 0 : i32
    %c0_i32_1 = arith.constant 0 : i32
    return %c0_i32, %c0_i32_0 : i32, i32
  }
  func.func @transform_2(%arg0: i32) -> (i32, i32) {
    %c0_i32 = arith.constant 0 : i32
    %c0_i32_0 = arith.constant 0 : i32
    return %arg0, %c0_i32 : i32, i32
  }
}

</mosaic_0001>

<llo_original>
// kernel: tpu_custom_call.1
$region0: #{tpu_custom_call.1}
  #allocation0 [shape = 'u32[]', space=smem, size = 0x4, offset = 0x4, fixed_abs, tag = 'smem constant byte address 0x4 - core index']
  #allocation1 [shape = 'u32[144,128]{1,0:T(1,128)}', space=vmem, size = 0x12000, scoped, tag = 'internal scratch']
  %s0 = inlined_call_operand.hbm [shape: s32[1,4,128], index: 0, kind: input, shape index: {}]
  %s1 = inlined_call_operand.hbm [shape: f32[16,32], index: 1, kind: input, shape index: {}]
  %s2 = inlined_call_operand.hbm [shape: f32[128,128], index: 2, kind: output, shape index: {}]
  %s3 = sld [smem:[#allocation0]]
  $region26: #{tpu_custom_call.1} parent=0
    _
  %s5 = ssub.s32 1, %s3
  %s6 = scalar_select 0, %s5, %s3
  $region1: #{tpu_custom_call.1} parent=0
    #allocation2 [shape = 'u8[2048]{0}', space=vmem, size = 0x800, scoped, tag = 'input window, operand 0, single buffered']
    #allocation3 [shape = 's32[1]{0}', space=sflag, size = 0x4, scoped, tag = 'scoped memory for tpu_custom_call.1']
    #allocation4 [shape = 's32[1]{0}', space=sflag, size = 0x4, scoped, tag = 'scoped memory for tpu_custom_call.1']
    #allocation5 [shape = 'u8[8192]{0}', space=vmem, size = 0x2000, scoped, tag = 'input window, operand 1, single buffered']
    #allocation6 [shape = 's32[1]{0}', space=sflag, size = 0x4, scoped, tag = 'scoped memory for tpu_custom_call.1']
    #allocation7 [shape = 'u8[65536]{0}', space=vmem, size = 0x10000, scoped, tag = 'output window, operand 0, single buffered']
    %7 = vsyncpa [#allocation3], 0
    %8 = vsyncpa [#allocation6], 0
    %9 = vsyncpa [#allocation4], 0
    // Predicated region
    $region2: #{tpu_custom_call.1} parent=1 // pred_check
      _
    $region3: #{tpu_custom_call.1} parent=1 // pred_check_branch
      %11 = sbr.rel (0) target = $region5
    $region4: #{tpu_custom_call.1} parent=1 // pred_region
      %s13 = ssub.s32 64, 64
      %14 = vsyncadd [#allocation3], %s13
      %s16 = sshll.u32 [#allocation2], 4
      %s17 = int_to_ptr.vmem [resolvable:$true] %s16
      %19 = dma.hbm_to_vmem [thread:$0]  %s0, 64, %s17, [#allocation3]
    $region5: #{tpu_custom_call.1} parent=1 // pred_fallthru
      _
    // Predicated region
    $region6: #{tpu_custom_call.1} parent=1 // pred_check
      _
    $region7: #{tpu_custom_call.1} parent=1 // pred_check_branch
      %21 = sbr.rel (0) target = $region9
    $region8: #{tpu_custom_call.1} parent=1 // pred_region
      %s23 = ssub.s32 256, 256
      %24 = vsyncadd [#allocation6], %s23
      %s25 = sshll.u32 [#allocation5], 4
      %s26 = int_to_ptr.vmem [resolvable:$true] %s25
      %31 = dma.hbm_to_vmem [thread:$0]  %s1, 256, %s26, [#allocation6], 128, 128, 8
    $region9: #{tpu_custom_call.1} parent=1 // pred_fallthru
      _
    // Predicated region
    $region10: #{tpu_custom_call.1} parent=1 // pred_check
      _
    $region11: #{tpu_custom_call.1} parent=1 // pred_check_branch
      %33 = sbr.rel (0) target = $region13
    $region12: #{tpu_custom_call.1} parent=1 // pred_region
      %34 = dma.done [#allocation3], 64
    $region13: #{tpu_custom_call.1} parent=1 // pred_fallthru
      _
    // Predicated region
    $region14: #{tpu_custom_call.1} parent=1 // pred_check
      _
    $region15: #{tpu_custom_call.1} parent=1 // pred_check_branch
      %36 = sbr.rel (0) target = $region17
    $region16: #{tpu_custom_call.1} parent=1 // pred_region
      %37 = dma.done [#allocation6], 256
    $region17: #{tpu_custom_call.1} parent=1 // pred_fallthru
      _
    %v38 = vld [vmem:[#allocation2] sm:$0x1]
    %v39 = vld [vmem:[#allocation2 + $0x1] sm:$0x1]
    %v40 = vld [vmem:[#allocation2 + $0x2] sm:$0x1]
    %v41 = vld [vmem:[#allocation2 + $0x3] sm:$0x1]
    %v42 = vlaneseq
    %v43 = vshrl.u32 %v42, 7
    %v44 = vadd.s32 %v43, 8
    %v45 = vld [vmem:[#allocation5] sm:$0xff]
    %v46 = vld [vmem:[#allocation5 + $0x8] sm:$0xff]
    %v47 = vlaneseq
    %v48 = vshrl.u32 %v47, 7
    %v49 = vsub.s32 0, %v48
    %v50 = vrot.slane %v38, %v49
    %vm51 = vcmp.eq.s32.totalorder %v43, %v50
    %vm52 = vcmp.eq.s32.totalorder %v44, %v50
    %v53 = vsel %vm51, 1, 0
    %v54 = vsel %vm52, 1, 0
    %v55 = vcvt.s32.f32 %v53
    %v56 = vcvt.s32.f32 %v54
    %57 = vxpose.xlu0.b32.start [1/16] %v55, 128
    %58 = vxpose.xlu0.b32.cont [2/16] %v56, 128
    %59 = vxpose.xlu0.b32.cont [3/16] 0.0, 128
    %60 = vxpose.xlu0.b32.cont [4/16] 0.0, 128
    %61 = vxpose.xlu0.b32.cont [5/16] 0.0, 128
    %62 = vxpose.xlu0.b32.cont [6/16] 0.0, 128
    %63 = vxpose.xlu0.b32.cont [7/16] 0.0, 128
    %64 = vxpose.xlu0.b32.cont [8/16] 0.0, 128
    %65 = vxpose.xlu0.b32.cont [9/16] 0.0, 128
    %66 = vxpose.xlu0.b32.cont [10/16] 0.0, 128
    %67 = vxpose.xlu0.b32.cont [11/16] 0.0, 128
    %68 = vxpose.xlu0.b32.cont [12/16] 0.0, 128
    %69 = vxpose.xlu0.b32.cont [13/16] 0.0, 128
    %70 = vxpose.xlu0.b32.cont [14/16] 0.0, 128
    %71 = vxpose.xlu0.b32.cont [15/16] 0.0, 128
    %72 = vxpose.xlu0.b32.end [16/16] 0.0, 128
    %v73 = vpop.trf.xlu0
    %v74 = vpop.trf.xlu0
    %v75 = vpop.trf.xlu0
    %v76 = vpop.trf.xlu0
    %v77 = vpop.trf.xlu0
    %v78 = vpop.trf.xlu0
    %v79 = vpop.trf.xlu0
    %v80 = vpop.trf.xlu0
    %v81 = vpop.trf.xlu0
    %v82 = vpop.trf.xlu0
    %v83 = vpop.trf.xlu0
    %v84 = vpop.trf.xlu0
    %v85 = vpop.trf.xlu0
    %v86 = vpop.trf.xlu0
    %v87 = vpop.trf.xlu0
    %v88 = vpop.trf.xlu0
    %vm89 = vcmask 130048
    %v91 = vsel %vm89, %v73, 0
    %v94 = vsel %vm89, %v74, 0
    %v97 = vsel %vm89, %v75, 0
    %v100 = vsel %vm89, %v76, 0
    %v103 = vsel %vm89, %v77, 0
    %v106 = vsel %vm89, %v78, 0
    %v109 = vsel %vm89, %v79, 0
    %v112 = vsel %vm89, %v80, 0
    %v115 = vsel %vm89, %v81, 0
    %v118 = vsel %vm89, %v82, 0
    %v121 = vsel %vm89, %v83, 0
    %v124 = vsel %vm89, %v84, 0
    %v127 = vsel %vm89, %v85, 0
    %v130 = vsel %vm89, %v86, 0
    %v133 = vsel %vm89, %v87, 0
    %v136 = vsel %vm89, %v88, 0
    %138 = vmatprep.subr.mxu0 0.0
    %139 = vmatpush1.msra.mxu0 0.0
    %140 = vmatprep.subr.mxu0 0.0
    %141 = vmatpush1.msra.mxu0 0.0
    %142 = vmatprep.subr.mxu0 0.0
    %143 = vmatpush1.msra.mxu0 0.0
    %144 = vmatprep.subr.mxu0 0.0
    %145 = vmatpush1.msra.mxu0 0.0
    %146 = vmatprep.subr.mxu0 0.0
    %147 = vmatpush1.msra.mxu0 0.0
    %148 = vmatprep.subr.mxu0 0.0
    %149 = vmatpush1.msra.mxu0 0.0
    %150 = vmatprep.subr.mxu0 0.0
    %151 = vmatpush1.msra.mxu0 0.0
    %152 = vmatprep.subr.mxu0 0.0
    %153 = vmatpush1.msra.mxu0 0.0
    %154 = vmatprep.subr.mxu0 0.0
    %155 = vmatpush1.msra.mxu0 0.0
    %156 = vmatprep.subr.mxu0 0.0
    %157 = vmatpush1.msra.mxu0 0.0
    %158 = vmatprep.subr.mxu0 0.0
    %159 = vmatpush1.msra.mxu0 0.0
    %160 = vmatprep.subr.mxu0 0.0
    %161 = vmatpush1.msra.mxu0 0.0
    %162 = vmatprep.subr.mxu0 0.0
    %163 = vmatpush1.msra.mxu0 0.0
    %164 = vmatprep.subr.mxu0 0.0
    %165 = vmatpush1.msra.mxu0 0.0
    %166 = vmatprep.subr.mxu0 0.0
    %167 = vmatpush1.msra.mxu0 %v46
    %168 = vmatprep.subr.mxu0 0.0
    %169 = vmatpush1.msra.mxu0 %v45
    %170 = vmatprep.subr.mxu0 0.0
    %171 = vmatpush2.msra.mxu0 0.0
    %172 = vmatprep.subr.mxu0 0.0
    %173 = vmatpush2.msra.mxu0 0.0
    %174 = vmatprep.subr.mxu0 0.0
    %175 = vmatpush2.msra.mxu0 0.0
    %176 = vmatprep.subr.mxu0 0.0
    %177 = vmatpush2.msra.mxu0 0.0
    %178 = vmatprep.subr.mxu0 0.0
    %179 = vmatpush2.msra.mxu0 0.0
    %180 = vmatprep.subr.mxu0 0.0
    %181 = vmatpush2.msra.mxu0 0.0
    %182 = vmatprep.subr.mxu0 0.0
    %183 = vmatpush2.msra.mxu0 0.0
    %184 = vmatprep.subr.mxu0 0.0
    %185 = vmatpush2.msra.mxu0 0.0
    %186 = vmatprep.subr.mxu0 0.0
    %187 = vmatpush2.msra.mxu0 0.0
    %188 = vmatprep.subr.mxu0 0.0
    %189 = vmatpush2.msra.mxu0 0.0
    %190 = vmatprep.subr.mxu0 0.0
    %191 = vmatpush2.msra.mxu0 0.0
    %192 = vmatprep.subr.mxu0 0.0
    %193 = vmatpush2.msra.mxu0 0.0
    %194 = vmatprep.subr.mxu0 0.0
    %195 = vmatpush2.msra.mxu0 0.0
    %196 = vmatprep.subr.mxu0 0.0
    %197 = vmatpush2.msra.mxu0 0.0
    %198 = vmatprep.subr.mxu0 0.0
    %199 = vmatpush2.msra.mxu0 0.0
    %200 = vmatprep.subr.mxu0 0.0
    %201 = vmatpush2.msra.mxu0 0.0
    %202 = vmatprep.mubr.f32.mxu0 0.0
    %203 = vmatmul.mubr.f32.gmra.mxu0 %v91
    %v204 = vpop.f32.mrf.mxu0
    %v205 = vadd.f32 0.0, %v204
    %v206 = vpop.f32.mrf.mxu0
    %207 = vmatprep.mubr.f32.mxu0 0.0
    %208 = vmatmul.mubr.f32.gmra.mxu0 %v94
    %v209 = vpop.f32.mrf.mxu0
    %v210 = vadd.f32 0.0, %v209
    %v211 = vpop.f32.mrf.mxu0
    %212 = vmatprep.mubr.f32.mxu0 0.0
    %213 = vmatmul.mubr.f32.gmra.mxu0 %v97
    %v214 = vpop.f32.mrf.mxu0
    %v215 = vadd.f32 0.0, %v214
    %v216 = vpop.f32.mrf.mxu0
    %217 = vmatprep.mubr.f32.mxu0 0.0
    %218 = vmatmul.mubr.f32.gmra.mxu0 %v100
    %v219 = vpop.f32.mrf.mxu0
    %v220 = vadd.f32 0.0, %v219
    %v221 = vpop.f32.mrf.mxu0
    %222 = vmatprep.mubr.f32.mxu0 0.0
    %223 = vmatmul.mubr.f32.gmra.mxu0 %v103
    %v224 = vpop.f32.mrf.mxu0
    %v225 = vadd.f32 0.0, %v224
    %v226 = vpop.f32.mrf.mxu0
    %227 = vmatprep.mubr.f32.mxu0 0.0
    %228 = vmatmul.mubr.f32.gmra.mxu0 %v106
    %v229 = vpop.f32.mrf.mxu0
    %v230 = vadd.f32 0.0, %v229
    %v231 = vpop.f32.mrf.mxu0
    %232 = vmatprep.mubr.f32.mxu0 0.0
    %233 = vmatmul.mubr.f32.gmra.mxu0 %v109
    %v234 = vpop.f32.mrf.mxu0
    %v235 = vadd.f32 0.0, %v234
    %v236 = vpop.f32.mrf.mxu0
    %237 = vmatprep.mubr.f32.mxu0 0.0
    %238 = vmatmul.mubr.f32.gmra.mxu0 %v112
    %v239 = vpop.f32.mrf.mxu0
    %v240 = vadd.f32 0.0, %v239
    %v241 = vpop.f32.mrf.mxu0
    %242 = vmatprep.mubr.f32.mxu0 0.0
    %243 = vmatmul.mubr.f32.gmra.mxu0 %v115
    %v244 = vpop.f32.mrf.mxu0
    %v245 = vadd.f32 0.0, %v244
    %v246 = vpop.f32.mrf.mxu0
    %247 = vmatprep.mubr.f32.mxu0 0.0
    %248 = vmatmul.mubr.f32.gmra.mxu0 %v118
    %v249 = vpop.f32.mrf.mxu0
    %v250 = vadd.f32 0.0, %v249
    %v251 = vpop.f32.mrf.mxu0
    %252 = vmatprep.mubr.f32.mxu0 0.0
    %253 = vmatmul.mubr.f32.gmra.mxu0 %v121
    %v254 = vpop.f32.mrf.mxu0
    %v255 = vadd.f32 0.0, %v254
    %v256 = vpop.f32.mrf.mxu0
    %257 = vmatprep.mubr.f32.mxu0 0.0
    %258 = vmatmul.mubr.f32.gmra.mxu0 %v124
    %v259 = vpop.f32.mrf.mxu0
    %v260 = vadd.f32 0.0, %v259
    %v261 = vpop.f32.mrf.mxu0
    %262 = vmatprep.mubr.f32.mxu0 0.0
    %263 = vmatmul.mubr.f32.gmra.mxu0 %v127
    %v264 = vpop.f32.mrf.mxu0
    %v265 = vadd.f32 0.0, %v264
    %v266 = vpop.f32.mrf.mxu0
    %267 = vmatprep.mubr.f32.mxu0 0.0
    %268 = vmatmul.mubr.f32.gmra.mxu0 %v130
    %v269 = vpop.f32.mrf.mxu0
    %v270 = vadd.f32 0.0, %v269
    %v271 = vpop.f32.mrf.mxu0
    %272 = vmatprep.mubr.f32.mxu0 0.0
    %273 = vmatmul.mubr.f32.gmra.mxu0 %v133
    %v274 = vpop.f32.mrf.mxu0
    %v275 = vadd.f32 0.0, %v274
    %v276 = vpop.f32.mrf.mxu0
    %277 = vmatprep.mubr.f32.mxu0 0.0
    %278 = vmatmul.mubr.f32.gmra.mxu0 %v136
    %v279 = vpop.f32.mrf.mxu0
    %v280 = vadd.f32 0.0, %v279
    %v281 = vpop.f32.mrf.mxu0
    %282 = vdwg.mxu0
    %v283 = vlaneseq
    %v284 = vshrl.u32 %v283, 7
    %v285 = vsub.s32 0, %v284
    %v286 = vrot.slane %v39, %v285
    %vm287 = vcmp.eq.s32.totalorder %v43, %v286
    %vm288 = vcmp.eq.s32.totalorder %v44, %v286
    %v289 = vsel %vm287, 1, 0
    %v290 = vsel %vm288, 1, 0
    %v291 = vcvt.s32.f32 %v289
    %v292 = vcvt.s32.f32 %v290
    %293 = vxpose.xlu0.b32.start [1/16] %v291, 128
    %294 = vxpose.xlu0.b32.cont [2/16] %v292, 128
    %295 = vxpose.xlu0.b32.cont [3/16] 0.0, 128
    %296 = vxpose.xlu0.b32.cont [4/16] 0.0, 128
    %297 = vxpose.xlu0.b32.cont [5/16] 0.0, 128
    %298 = vxpose.xlu0.b32.cont [6/16] 0.0, 128
    %299 = vxpose.xlu0.b32.cont [7/16] 0.0, 128
    %300 = vxpose.xlu0.b32.cont [8/16] 0.0, 128
    %301 = vxpose.xlu0.b32.cont [9/16] 0.0, 128
    %302 = vxpose.xlu0.b32.cont [10/16] 0.0, 128
    %303 = vxpose.xlu0.b32.cont [11/16] 0.0, 128
    %304 = vxpose.xlu0.b32.cont [12/16] 0.0, 128
    %305 = vxpose.xlu0.b32.cont [13/16] 0.0, 128
    %306 = vxpose.xlu0.b32.cont [14/16] 0.0, 128
    %307 = vxpose.xlu0.b32.cont [15/16] 0.0, 128
    %308 = vxpose.xlu0.b32.end [16/16] 0.0, 128
    %v309 = vpop.trf.xlu0
    %v310 = vpop.trf.xlu0
    %v311 = vpop.trf.xlu0
    %v312 = vpop.trf.xlu0
    %v313 = vpop.trf.xlu0
    %v314 = vpop.trf.xlu0
    %v315 = vpop.trf.xlu0
    %v316 = vpop.trf.xlu0
    %v317 = vpop.trf.xlu0
    %v318 = vpop.trf.xlu0
    %v319 = vpop.trf.xlu0
    %v320 = vpop.trf.xlu0
    %v321 = vpop.trf.xlu0
    %v322 = vpop.trf.xlu0
    %v323 = vpop.trf.xlu0
    %v324 = vpop.trf.xlu0
    %v326 = vsel %vm89, %v309, 0
    %v329 = vsel %vm89, %v310, 0
    %v332 = vsel %vm89, %v311, 0
    %v335 = vsel %vm89, %v312, 0
    %v338 = vsel %vm89, %v313, 0
    %v341 = vsel %vm89, %v314, 0
    %v344 = vsel %vm89, %v315, 0
    %v347 = vsel %vm89, %v316, 0
    %v350 = vsel %vm89, %v317, 0
    %v353 = vsel %vm89, %v318, 0
    %v356 = vsel %vm89, %v319, 0
    %v359 = vsel %vm89, %v320, 0
    %v362 = vsel %vm89, %v321, 0
    %v365 = vsel %vm89, %v322, 0
    %v368 = vsel %vm89, %v323, 0
    %v371 = vsel %vm89, %v324, 0
    %373 = vmatprep.subr.mxu0 0.0
    %374 = vmatpush1.msra.mxu0 0.0
    %375 = vmatprep.subr.mxu0 0.0
    %376 = vmatpush1.msra.mxu0 0.0
    %377 = vmatprep.subr.mxu0 0.0
    %378 = vmatpush1.msra.mxu0 0.0
    %379 = vmatprep.subr.mxu0 0.0
    %380 = vmatpush1.msra.mxu0 0.0
    %381 = vmatprep.subr.mxu0 0.0
    %382 = vmatpush1.msra.mxu0 0.0
    %383 = vmatprep.subr.mxu0 0.0
    %384 = vmatpush1.msra.mxu0 0.0
    %385 = vmatprep.subr.mxu0 0.0
    %386 = vmatpush1.msra.mxu0 0.0
    %387 = vmatprep.subr.mxu0 0.0
    %388 = vmatpush1.msra.mxu0 0.0
    %389 = vmatprep.subr.mxu0 0.0
    %390 = vmatpush1.msra.mxu0 0.0
    %391 = vmatprep.subr.mxu0 0.0
    %392 = vmatpush1.msra.mxu0 0.0
    %393 = vmatprep.subr.mxu0 0.0
    %394 = vmatpush1.msra.mxu0 0.0
    %395 = vmatprep.subr.mxu0 0.0
    %396 = vmatpush1.msra.mxu0 0.0
    %397 = vmatprep.subr.mxu0 0.0
    %398 = vmatpush1.msra.mxu0 0.0
    %399 = vmatprep.subr.mxu0 0.0
    %400 = vmatpush1.msra.mxu0 0.0
    %401 = vmatprep.subr.mxu0 0.0
    %402 = vmatpush1.msra.mxu0 %v46
    %403 = vmatprep.subr.mxu0 0.0
    %404 = vmatpush1.msra.mxu0 %v45
    %405 = vmatprep.subr.mxu0 0.0
    %406 = vmatpush2.msra.mxu0 0.0
    %407 = vmatprep.subr.mxu0 0.0
    %408 = vmatpush2.msra.mxu0 0.0
    %409 = vmatprep.subr.mxu0 0.0
    %410 = vmatpush2.msra.mxu0 0.0
    %411 = vmatprep.subr.mxu0 0.0
    %412 = vmatpush2.msra.mxu0 0.0
    %413 = vmatprep.subr.mxu0 0.0
    %414 = vmatpush2.msra.mxu0 0.0
    %415 = vmatprep.subr.mxu0 0.0
    %416 = vmatpush2.msra.mxu0 0.0
    %417 = vmatprep.subr.mxu0 0.0
    %418 = vmatpush2.msra.mxu0 0.0
    %419 = vmatprep.subr.mxu0 0.0
    %420 = vmatpush2.msra.mxu0 0.0
    %421 = vmatprep.subr.mxu0 0.0
    %422 = vmatpush2.msra.mxu0 0.0
    %423 = vmatprep.subr.mxu0 0.0
    %424 = vmatpush2.msra.mxu0 0.0
    %425 = vmatprep.subr.mxu0 0.0
    %426 = vmatpush2.msra.mxu0 0.0
    %427 = vmatprep.subr.mxu0 0.0
    %428 = vmatpush2.msra.mxu0 0.0
    %429 = vmatprep.subr.mxu0 0.0
    %430 = vmatpush2.msra.mxu0 0.0
    %431 = vmatprep.subr.mxu0 0.0
    %432 = vmatpush2.msra.mxu0 0.0
    %433 = vmatprep.subr.mxu0 0.0
    %434 = vmatpush2.msra.mxu0 0.0
    %435 = vmatprep.subr.mxu0 0.0
    %436 = vmatpush2.msra.mxu0 0.0
    %437 = vmatprep.mubr.f32.mxu0 0.0
    %438 = vmatmul.mubr.f32.gmra.mxu0 %v326
    %v439 = vpop.f32.mrf.mxu0
    %v440 = vadd.f32 0.0, %v439
    %v441 = vpop.f32.mrf.mxu0
    %442 = vmatprep.mubr.f32.mxu0 0.0
    %443 = vmatmul.mubr.f32.gmra.mxu0 %v329
    %v444 = vpop.f32.mrf.mxu0
    %v445 = vadd.f32 0.0, %v444
    %v446 = vpop.f32.mrf.mxu0
    %447 = vmatprep.mubr.f32.mxu0 0.0
    %448 = vmatmul.mubr.f32.gmra.mxu0 %v332
    %v449 = vpop.f32.mrf.mxu0
    %v450 = vadd.f32 0.0, %v449
    %v451 = vpop.f32.mrf.mxu0
    %452 = vmatprep.mubr.f32.mxu0 0.0
    %453 = vmatmul.mubr.f32.gmra.mxu0 %v335
    %v454 = vpop.f32.mrf.mxu0
    %v455 = vadd.f32 0.0, %v454
    %v456 = vpop.f32.mrf.mxu0
    %457 = vmatprep.mubr.f32.mxu0 0.0
    %458 = vmatmul.mubr.f32.gmra.mxu0 %v338
    %v459 = vpop.f32.mrf.mxu0
    %v460 = vadd.f32 0.0, %v459
    %v461 = vpop.f32.mrf.mxu0
    %462 = vmatprep.mubr.f32.mxu0 0.0
    %463 = vmatmul.mubr.f32.gmra.mxu0 %v341
    %v464 = vpop.f32.mrf.mxu0
    %v465 = vadd.f32 0.0, %v464
    %v466 = vpop.f32.mrf.mxu0
    %467 = vmatprep.mubr.f32.mxu0 0.0
    %468 = vmatmul.mubr.f32.gmra.mxu0 %v344
    %v469 = vpop.f32.mrf.mxu0
    %v470 = vadd.f32 0.0, %v469
    %v471 = vpop.f32.mrf.mxu0
    %472 = vmatprep.mubr.f32.mxu0 0.0
    %473 = vmatmul.mubr.f32.gmra.mxu0 %v347
    %v474 = vpop.f32.mrf.mxu0
    %v475 = vadd.f32 0.0, %v474
    %v476 = vpop.f32.mrf.mxu0
    %477 = vmatprep.mubr.f32.mxu0 0.0
    %478 = vmatmul.mubr.f32.gmra.mxu0 %v350
    %v479 = vpop.f32.mrf.mxu0
    %v480 = vadd.f32 0.0, %v479
    %v481 = vpop.f32.mrf.mxu0
    %482 = vmatprep.mubr.f32.mxu0 0.0
    %483 = vmatmul.mubr.f32.gmra.mxu0 %v353
    %v484 = vpop.f32.mrf.mxu0
    %v485 = vadd.f32 0.0, %v484
    %v486 = vpop.f32.mrf.mxu0
    %487 = vmatprep.mubr.f32.mxu0 0.0
    %488 = vmatmul.mubr.f32.gmra.mxu0 %v356
    %v489 = vpop.f32.mrf.mxu0
    %v490 = vadd.f32 0.0, %v489
    %v491 = vpop.f32.mrf.mxu0
    %492 = vmatprep.mubr.f32.mxu0 0.0
    %493 = vmatmul.mubr.f32.gmra.mxu0 %v359
    %v494 = vpop.f32.mrf.mxu0
    %v495 = vadd.f32 0.0, %v494
    %v496 = vpop.f32.mrf.mxu0
    %497 = vmatprep.mubr.f32.mxu0 0.0
    %498 = vmatmul.mubr.f32.gmra.mxu0 %v362
    %v499 = vpop.f32.mrf.mxu0
    %v500 = vadd.f32 0.0, %v499
    %v501 = vpop.f32.mrf.mxu0
    %502 = vmatprep.mubr.f32.mxu0 0.0
    %503 = vmatmul.mubr.f32.gmra.mxu0 %v365
    %v504 = vpop.f32.mrf.mxu0
    %v505 = vadd.f32 0.0, %v504
    %v506 = vpop.f32.mrf.mxu0
    %507 = vmatprep.mubr.f32.mxu0 0.0
    %508 = vmatmul.mubr.f32.gmra.mxu0 %v368
    %v509 = vpop.f32.mrf.mxu0
    %v510 = vadd.f32 0.0, %v509
    %v511 = vpop.f32.mrf.mxu0
    %512 = vmatprep.mubr.f32.mxu0 0.0
    %513 = vmatmul.mubr.f32.gmra.mxu0 %v371
    %v514 = vpop.f32.mrf.mxu0
    %v515 = vadd.f32 0.0, %v514
    %v516 = vpop.f32.mrf.mxu0
    %517 = vdwg.mxu0
    %v518 = vlaneseq
    %v519 = vshrl.u32 %v518, 7
    %v520 = vsub.s32 0, %v519
    %v521 = vrot.slane %v40, %v520
    %vm522 = vcmp.eq.s32.totalorder %v43, %v521
    %vm523 = vcmp.eq.s32.totalorder %v44, %v521
    %v524 = vsel %vm522, 1, 0
    %v525 = vsel %vm523, 1, 0
    %v526 = vcvt.s32.f32 %v524
    %v527 = vcvt.s32.f32 %v525
    %528 = vxpose.xlu0.b32.start [1/16] %v526, 128
    %529 = vxpose.xlu0.b32.cont [2/16] %v527, 128
    %530 = vxpose.xlu0.b32.cont [3/16] 0.0, 128
    %531 = vxpose.xlu0.b32.cont [4/16] 0.0, 128
    %532 = vxpose.xlu0.b32.cont [5/16] 0.0, 128
    %533 = vxpose.xlu0.b32.cont [6/16] 0.0, 128
    %534 = vxpose.xlu0.b32.cont [7/16] 0.0, 128
    %535 = vxpose.xlu0.b32.cont [8/16] 0.0, 128
    %536 = vxpose.xlu0.b32.cont [9/16] 0.0, 128
    %537 = vxpose.xlu0.b32.cont [10/16] 0.0, 128
    %538 = vxpose.xlu0.b32.cont [11/16] 0.0, 128
    %539 = vxpose.xlu0.b32.cont [12/16] 0.0, 128
    %540 = vxpose.xlu0.b32.cont [13/16] 0.0, 128
    %541 = vxpose.xlu0.b32.cont [14/16] 0.0, 128
    %542 = vxpose.xlu0.b32.cont [15/16] 0.0, 128
    %543 = vxpose.xlu0.b32.end [16/16] 0.0, 128
    %v544 = vpop.trf.xlu0
    %v545 = vpop.trf.xlu0
    %v546 = vpop.trf.xlu0
    %v547 = vpop.trf.xlu0
    %v548 = vpop.trf.xlu0
    %v549 = vpop.trf.xlu0
    %v550 = vpop.trf.xlu0
    %v551 = vpop.trf.xlu0
    %v552 = vpop.trf.xlu0
    %v553 = vpop.trf.xlu0
    %v554 = vpop.trf.xlu0
    %v555 = vpop.trf.xlu0
    %v556 = vpop.trf.xlu0
    %v557 = vpop.trf.xlu0
    %v558 = vpop.trf.xlu0
    %v559 = vpop.trf.xlu0
    %v561 = vsel %vm89, %v544, 0
    %v564 = vsel %vm89, %v545, 0
    %v567 = vsel %vm89, %v546, 0
    %v570 = vsel %vm89, %v547, 0
    %v573 = vsel %vm89, %v548, 0
    %v576 = vsel %vm89, %v549, 0
    %v579 = vsel %vm89, %v550, 0
    %v582 = vsel %vm89, %v551, 0
    %v585 = vsel %vm89, %v552, 0
    %v588 = vsel %vm89, %v553, 0
    %v591 = vsel %vm89, %v554, 0
    %v594 = vsel %vm89, %v555, 0
    %v597 = vsel %vm89, %v556, 0
    %v600 = vsel %vm89, %v557, 0
    %v603 = vsel %vm89, %v558, 0
    %v606 = vsel %vm89, %v559, 0
    %608 = vmatprep.subr.mxu0 0.0
    %609 = vmatpush1.msra.mxu0 0.0
    %610 = vmatprep.subr.mxu0 0.0
    %611 = vmatpush1.msra.mxu0 0.0
    %612 = vmatprep.subr.mxu0 0.0
    %613 = vmatpush1.msra.mxu0 0.0
    %614 = vmatprep.subr.mxu0 0.0
    %615 = vmatpush1.msra.mxu0 0.0
    %616 = vmatprep.subr.mxu0 0.0
    %617 = vmatpush1.msra.mxu0 0.0
    %618 = vmatprep.subr.mxu0 0.0
    %619 = vmatpush1.msra.mxu0 0.0
    %620 = vmatprep.subr.mxu0 0.0
    %621 = vmatpush1.msra.mxu0 0.0
    %622 = vmatprep.subr.mxu0 0.0
    %623 = vmatpush1.msra.mxu0 0.0
    %624 = vmatprep.subr.mxu0 0.0
    %625 = vmatpush1.msra.mxu0 0.0
    %626 = vmatprep.subr.mxu0 0.0
    %627 = vmatpush1.msra.mxu0 0.0
    %628 = vmatprep.subr.mxu0 0.0
    %629 = vmatpush1.msra.mxu0 0.0
    %630 = vmatprep.subr.mxu0 0.0
    %631 = vmatpush1.msra.mxu0 0.0
    %632 = vmatprep.subr.mxu0 0.0
    %633 = vmatpush1.msra.mxu0 0.0
    %634 = vmatprep.subr.mxu0 0.0
    %635 = vmatpush1.msra.mxu0 0.0
    %636 = vmatprep.subr.mxu0 0.0
    %637 = vmatpush1.msra.mxu0 %v46
    %638 = vmatprep.subr.mxu0 0.0
    %639 = vmatpush1.msra.mxu0 %v45
    %640 = vmatprep.subr.mxu0 0.0
    %641 = vmatpush2.msra.mxu0 0.0
    %642 = vmatprep.subr.mxu0 0.0
    %643 = vmatpush2.msra.mxu0 0.0
    %644 = vmatprep.subr.mxu0 0.0
    %645 = vmatpush2.msra.mxu0 0.0
    %646 = vmatprep.subr.mxu0 0.0
    %647 = vmatpush2.msra.mxu0 0.0
    %648 = vmatprep.subr.mxu0 0.0
    %649 = vmatpush2.msra.mxu0 0.0
    %650 = vmatprep.subr.mxu0 0.0
    %651 = vmatpush2.msra.mxu0 0.0
    %652 = vmatprep.subr.mxu0 0.0
    %653 = vmatpush2.msra.mxu0 0.0
    %654 = vmatprep.subr.mxu0 0.0
    %655 = vmatpush2.msra.mxu0 0.0
    %656 = vmatprep.subr.mxu0 0.0
    %657 = vmatpush2.msra.mxu0 0.0
    %658 = vmatprep.subr.mxu0 0.0
    %659 = vmatpush2.msra.mxu0 0.0
    %660 = vmatprep.subr.mxu0 0.0
    %661 = vmatpush2.msra.mxu0 0.0
    %662 = vmatprep.subr.mxu0 0.0
    %663 = vmatpush2.msra.mxu0 0.0
    %664 = vmatprep.subr.mxu0 0.0
    %665 = vmatpush2.msra.mxu0 0.0
    %666 = vmatprep.subr.mxu0 0.0
    %667 = vmatpush2.msra.mxu0 0.0
    %668 = vmatprep.subr.mxu0 0.0
    %669 = vmatpush2.msra.mxu0 0.0
    %670 = vmatprep.subr.mxu0 0.0
    %671 = vmatpush2.msra.mxu0 0.0
    %672 = vmatprep.mubr.f32.mxu0 0.0
    %673 = vmatmul.mubr.f32.gmra.mxu0 %v561
    %v674 = vpop.f32.mrf.mxu0
    %v675 = vadd.f32 0.0, %v674
    %v676 = vpop.f32.mrf.mxu0
    %677 = vmatprep.mubr.f32.mxu0 0.0
    %678 = vmatmul.mubr.f32.gmra.mxu0 %v564
    %v679 = vpop.f32.mrf.mxu0
    %v680 = vadd.f32 0.0, %v679
    %v681 = vpop.f32.mrf.mxu0
    %682 = vmatprep.mubr.f32.mxu0 0.0
    %683 = vmatmul.mubr.f32.gmra.mxu0 %v567
    %v684 = vpop.f32.mrf.mxu0
    %v685 = vadd.f32 0.0, %v684
    %v686 = vpop.f32.mrf.mxu0
    %687 = vmatprep.mubr.f32.mxu0 0.0
    %688 = vmatmul.mubr.f32.gmra.mxu0 %v570
    %v689 = vpop.f32.mrf.mxu0
    %v690 = vadd.f32 0.0, %v689
    %v691 = vpop.f32.mrf.mxu0
    %692 = vmatprep.mubr.f32.mxu0 0.0
    %693 = vmatmul.mubr.f32.gmra.mxu0 %v573
    %v694 = vpop.f32.mrf.mxu0
    %v695 = vadd.f32 0.0, %v694
    %v696 = vpop.f32.mrf.mxu0
    %697 = vmatprep.mubr.f32.mxu0 0.0
    %698 = vmatmul.mubr.f32.gmra.mxu0 %v576
    %v699 = vpop.f32.mrf.mxu0
    %v700 = vadd.f32 0.0, %v699
    %v701 = vpop.f32.mrf.mxu0
    %702 = vmatprep.mubr.f32.mxu0 0.0
    %703 = vmatmul.mubr.f32.gmra.mxu0 %v579
    %v704 = vpop.f32.mrf.mxu0
    %v705 = vadd.f32 0.0, %v704
    %v706 = vpop.f32.mrf.mxu0
    %707 = vmatprep.mubr.f32.mxu0 0.0
    %708 = vmatmul.mubr.f32.gmra.mxu0 %v582
    %v709 = vpop.f32.mrf.mxu0
    %v710 = vadd.f32 0.0, %v709
    %v711 = vpop.f32.mrf.mxu0
    %712 = vmatprep.mubr.f32.mxu0 0.0
    %713 = vmatmul.mubr.f32.gmra.mxu0 %v585
    %v714 = vpop.f32.mrf.mxu0
    %v715 = vadd.f32 0.0, %v714
    %v716 = vpop.f32.mrf.mxu0
    %717 = vmatprep.mubr.f32.mxu0 0.0
    %718 = vmatmul.mubr.f32.gmra.mxu0 %v588
    %v719 = vpop.f32.mrf.mxu0
    %v720 = vadd.f32 0.0, %v719
    %v721 = vpop.f32.mrf.mxu0
    %722 = vmatprep.mubr.f32.mxu0 0.0
    %723 = vmatmul.mubr.f32.gmra.mxu0 %v591
    %v724 = vpop.f32.mrf.mxu0
    %v725 = vadd.f32 0.0, %v724
    %v726 = vpop.f32.mrf.mxu0
    %727 = vmatprep.mubr.f32.mxu0 0.0
    %728 = vmatmul.mubr.f32.gmra.mxu0 %v594
    %v729 = vpop.f32.mrf.mxu0
    %v730 = vadd.f32 0.0, %v729
    %v731 = vpop.f32.mrf.mxu0
    %732 = vmatprep.mubr.f32.mxu0 0.0
    %733 = vmatmul.mubr.f32.gmra.mxu0 %v597
    %v734 = vpop.f32.mrf.mxu0
    %v735 = vadd.f32 0.0, %v734
    %v736 = vpop.f32.mrf.mxu0
    %737 = vmatprep.mubr.f32.mxu0 0.0
    %738 = vmatmul.mubr.f32.gmra.mxu0 %v600
    %v739 = vpop.f32.mrf.mxu0
    %v740 = vadd.f32 0.0, %v739
    %v741 = vpop.f32.mrf.mxu0
    %742 = vmatprep.mubr.f32.mxu0 0.0
    %743 = vmatmul.mubr.f32.gmra.mxu0 %v603
    %v744 = vpop.f32.mrf.mxu0
    %v745 = vadd.f32 0.0, %v744
    %v746 = vpop.f32.mrf.mxu0
    %747 = vmatprep.mubr.f32.mxu0 0.0
    %748 = vmatmul.mubr.f32.gmra.mxu0 %v606
    %v749 = vpop.f32.mrf.mxu0
    %v750 = vadd.f32 0.0, %v749
    %v751 = vpop.f32.mrf.mxu0
    %752 = vdwg.mxu0
    %v753 = vlaneseq
    %v754 = vshrl.u32 %v753, 7
    %v755 = vsub.s32 0, %v754
    %v756 = vrot.slane %v41, %v755
    %vm757 = vcmp.eq.s32.totalorder %v43, %v756
    %vm758 = vcmp.eq.s32.totalorder %v44, %v756
    %v759 = vsel %vm757, 1, 0
    %v760 = vsel %vm758, 1, 0
    %v761 = vcvt.s32.f32 %v759
    %v762 = vcvt.s32.f32 %v760
    %763 = vxpose.xlu0.b32.start [1/16] %v761, 128
    %764 = vxpose.xlu0.b32.cont [2/16] %v762, 128
    %765 = vxpose.xlu0.b32.cont [3/16] 0.0, 128
    %766 = vxpose.xlu0.b32.cont [4/16] 0.0, 128
    %767 = vxpose.xlu0.b32.cont [5/16] 0.0, 128
    %768 = vxpose.xlu0.b32.cont [6/16] 0.0, 128
    %769 = vxpose.xlu0.b32.cont [7/16] 0.0, 128
    %770 = vxpose.xlu0.b32.cont [8/16] 0.0, 128
    %771 = vxpose.xlu0.b32.cont [9/16] 0.0, 128
    %772 = vxpose.xlu0.b32.cont [10/16] 0.0, 128
    %773 = vxpose.xlu0.b32.cont [11/16] 0.0, 128
    %774 = vxpose.xlu0.b32.cont [12/16] 0.0, 128
    %775 = vxpose.xlu0.b32.cont [13/16] 0.0, 128
    %776 = vxpose.xlu0.b32.cont [14/16] 0.0, 128
    %777 = vxpose.xlu0.b32.cont [15/16] 0.0, 128
    %778 = vxpose.xlu0.b32.end [16/16] 0.0, 128
    %v779 = vpop.trf.xlu0
    %v780 = vpop.trf.xlu0
    %v781 = vpop.trf.xlu0
    %v782 = vpop.trf.xlu0
    %v783 = vpop.trf.xlu0
    %v784 = vpop.trf.xlu0
    %v785 = vpop.trf.xlu0
    %v786 = vpop.trf.xlu0
    %v787 = vpop.trf.xlu0
    %v788 = vpop.trf.xlu0
    %v789 = vpop.trf.xlu0
    %v790 = vpop.trf.xlu0
    %v791 = vpop.trf.xlu0
    %v792 = vpop.trf.xlu0
    %v793 = vpop.trf.xlu0
    %v794 = vpop.trf.xlu0
    %v796 = vsel %vm89, %v779, 0
    %v799 = vsel %vm89, %v780, 0
    %v802 = vsel %vm89, %v781, 0
    %v805 = vsel %vm89, %v782, 0
    %v808 = vsel %vm89, %v783, 0
    %v811 = vsel %vm89, %v784, 0
    %v814 = vsel %vm89, %v785, 0
    %v817 = vsel %vm89, %v786, 0
    %v820 = vsel %vm89, %v787, 0
    %v823 = vsel %vm89, %v788, 0
    %v826 = vsel %vm89, %v789, 0
    %v829 = vsel %vm89, %v790, 0
    %v832 = vsel %vm89, %v791, 0
    %v835 = vsel %vm89, %v792, 0
    %v838 = vsel %vm89, %v793, 0
    %v841 = vsel %vm89, %v794, 0
    %843 = vmatprep.subr.mxu0 0.0
    %844 = vmatpush1.msra.mxu0 0.0
    %845 = vmatprep.subr.mxu0 0.0
    %846 = vmatpush1.msra.mxu0 0.0
    %847 = vmatprep.subr.mxu0 0.0
    %848 = vmatpush1.msra.mxu0 0.0
    %849 = vmatprep.subr.mxu0 0.0
    %850 = vmatpush1.msra.mxu0 0.0
    %851 = vmatprep.subr.mxu0 0.0
    %852 = vmatpush1.msra.mxu0 0.0
    %853 = vmatprep.subr.mxu0 0.0
    %854 = vmatpush1.msra.mxu0 0.0
    %855 = vmatprep.subr.mxu0 0.0
    %856 = vmatpush1.msra.mxu0 0.0
    %857 = vmatprep.subr.mxu0 0.0
    %858 = vmatpush1.msra.mxu0 0.0
    %859 = vmatprep.subr.mxu0 0.0
    %860 = vmatpush1.msra.mxu0 0.0
    %861 = vmatprep.subr.mxu0 0.0
    %862 = vmatpush1.msra.mxu0 0.0
    %863 = vmatprep.subr.mxu0 0.0
    %864 = vmatpush1.msra.mxu0 0.0
    %865 = vmatprep.subr.mxu0 0.0
    %866 = vmatpush1.msra.mxu0 0.0
    %867 = vmatprep.subr.mxu0 0.0
    %868 = vmatpush1.msra.mxu0 0.0
    %869 = vmatprep.subr.mxu0 0.0
    %870 = vmatpush1.msra.mxu0 0.0
    %871 = vmatprep.subr.mxu0 0.0
    %872 = vmatpush1.msra.mxu0 %v46
    %873 = vmatprep.subr.mxu0 0.0
    %874 = vmatpush1.msra.mxu0 %v45
    %875 = vmatprep.subr.mxu0 0.0
    %876 = vmatpush2.msra.mxu0 0.0
    %877 = vmatprep.subr.mxu0 0.0
    %878 = vmatpush2.msra.mxu0 0.0
    %879 = vmatprep.subr.mxu0 0.0
    %880 = vmatpush2.msra.mxu0 0.0
    %881 = vmatprep.subr.mxu0 0.0
    %882 = vmatpush2.msra.mxu0 0.0
    %883 = vmatprep.subr.mxu0 0.0
    %884 = vmatpush2.msra.mxu0 0.0
    %885 = vmatprep.subr.mxu0 0.0
    %886 = vmatpush2.msra.mxu0 0.0
    %887 = vmatprep.subr.mxu0 0.0
    %888 = vmatpush2.msra.mxu0 0.0
    %889 = vmatprep.subr.mxu0 0.0
    %890 = vmatpush2.msra.mxu0 0.0
    %891 = vmatprep.subr.mxu0 0.0
    %892 = vmatpush2.msra.mxu0 0.0
    %893 = vmatprep.subr.mxu0 0.0
    %894 = vmatpush2.msra.mxu0 0.0
    %895 = vmatprep.subr.mxu0 0.0
    %896 = vmatpush2.msra.mxu0 0.0
    %897 = vmatprep.subr.mxu0 0.0
    %898 = vmatpush2.msra.mxu0 0.0
    %899 = vmatprep.subr.mxu0 0.0
    %900 = vmatpush2.msra.mxu0 0.0
    %901 = vmatprep.subr.mxu0 0.0
    %902 = vmatpush2.msra.mxu0 0.0
    %903 = vmatprep.subr.mxu0 0.0
    %904 = vmatpush2.msra.mxu0 0.0
    %905 = vmatprep.subr.mxu0 0.0
    %906 = vmatpush2.msra.mxu0 0.0
    %907 = vmatprep.mubr.f32.mxu0 0.0
    %908 = vmatmul.mubr.f32.gmra.mxu0 %v796
    %v909 = vpop.f32.mrf.mxu0
    %v910 = vadd.f32 0.0, %v909
    %v911 = vpop.f32.mrf.mxu0
    %912 = vmatprep.mubr.f32.mxu0 0.0
    %913 = vmatmul.mubr.f32.gmra.mxu0 %v799
    %v914 = vpop.f32.mrf.mxu0
    %v915 = vadd.f32 0.0, %v914
    %v916 = vpop.f32.mrf.mxu0
    %917 = vmatprep.mubr.f32.mxu0 0.0
    %918 = vmatmul.mubr.f32.gmra.mxu0 %v802
    %v919 = vpop.f32.mrf.mxu0
    %v920 = vadd.f32 0.0, %v919
    %v921 = vpop.f32.mrf.mxu0
    %922 = vmatprep.mubr.f32.mxu0 0.0
    %923 = vmatmul.mubr.f32.gmra.mxu0 %v805
    %v924 = vpop.f32.mrf.mxu0
    %v925 = vadd.f32 0.0, %v924
    %v926 = vpop.f32.mrf.mxu0
    %927 = vmatprep.mubr.f32.mxu0 0.0
    %928 = vmatmul.mubr.f32.gmra.mxu0 %v808
    %v929 = vpop.f32.mrf.mxu0
    %v930 = vadd.f32 0.0, %v929
    %v931 = vpop.f32.mrf.mxu0
    %932 = vmatprep.mubr.f32.mxu0 0.0
    %933 = vmatmul.mubr.f32.gmra.mxu0 %v811
    %v934 = vpop.f32.mrf.mxu0
    %v935 = vadd.f32 0.0, %v934
    %v936 = vpop.f32.mrf.mxu0
    %937 = vmatprep.mubr.f32.mxu0 0.0
    %938 = vmatmul.mubr.f32.gmra.mxu0 %v814
    %v939 = vpop.f32.mrf.mxu0
    %v940 = vadd.f32 0.0, %v939
    %v941 = vpop.f32.mrf.mxu0
    %942 = vmatprep.mubr.f32.mxu0 0.0
    %943 = vmatmul.mubr.f32.gmra.mxu0 %v817
    %v944 = vpop.f32.mrf.mxu0
    %v945 = vadd.f32 0.0, %v944
    %v946 = vpop.f32.mrf.mxu0
    %947 = vmatprep.mubr.f32.mxu0 0.0
    %948 = vmatmul.mubr.f32.gmra.mxu0 %v820
    %v949 = vpop.f32.mrf.mxu0
    %v950 = vadd.f32 0.0, %v949
    %v951 = vpop.f32.mrf.mxu0
    %952 = vmatprep.mubr.f32.mxu0 0.0
    %953 = vmatmul.mubr.f32.gmra.mxu0 %v823
    %v954 = vpop.f32.mrf.mxu0
    %v955 = vadd.f32 0.0, %v954
    %v956 = vpop.f32.mrf.mxu0
    %957 = vmatprep.mubr.f32.mxu0 0.0
    %958 = vmatmul.mubr.f32.gmra.mxu0 %v826
    %v959 = vpop.f32.mrf.mxu0
    %v960 = vadd.f32 0.0, %v959
    %v961 = vpop.f32.mrf.mxu0
    %962 = vmatprep.mubr.f32.mxu0 0.0
    %963 = vmatmul.mubr.f32.gmra.mxu0 %v829
    %v964 = vpop.f32.mrf.mxu0
    %v965 = vadd.f32 0.0, %v964
    %v966 = vpop.f32.mrf.mxu0
    %967 = vmatprep.mubr.f32.mxu0 0.0
    %968 = vmatmul.mubr.f32.gmra.mxu0 %v832
    %v969 = vpop.f32.mrf.mxu0
    %v970 = vadd.f32 0.0, %v969
    %v971 = vpop.f32.mrf.mxu0
    %972 = vmatprep.mubr.f32.mxu0 0.0
    %973 = vmatmul.mubr.f32.gmra.mxu0 %v835
    %v974 = vpop.f32.mrf.mxu0
    %v975 = vadd.f32 0.0, %v974
    %v976 = vpop.f32.mrf.mxu0
    %977 = vmatprep.mubr.f32.mxu0 0.0
    %978 = vmatmul.mubr.f32.gmra.mxu0 %v838
    %v979 = vpop.f32.mrf.mxu0
    %v980 = vadd.f32 0.0, %v979
    %v981 = vpop.f32.mrf.mxu0
    %982 = vmatprep.mubr.f32.mxu0 0.0
    %983 = vmatmul.mubr.f32.gmra.mxu0 %v841
    %v984 = vpop.f32.mrf.mxu0
    %v985 = vadd.f32 0.0, %v984
    %v986 = vpop.f32.mrf.mxu0
    %987 = vdwg.mxu0
    %1004 = vrot.lane.b32.xlu0 %v440, 32
    %v1005 = vpop.permute.xlu0 %1004
    %1006 = vrot.lane.b32.xlu0 %v445, 32
    %v1007 = vpop.permute.xlu0 %1006
    %1008 = vrot.lane.b32.xlu0 %v450, 32
    %v1009 = vpop.permute.xlu0 %1008
    %1010 = vrot.lane.b32.xlu0 %v455, 32
    %v1011 = vpop.permute.xlu0 %1010
    %1012 = vrot.lane.b32.xlu0 %v460, 32
    %v1013 = vpop.permute.xlu0 %1012
    %1014 = vrot.lane.b32.xlu0 %v465, 32
    %v1015 = vpop.permute.xlu0 %1014
    %1016 = vrot.lane.b32.xlu0 %v470, 32
    %v1017 = vpop.permute.xlu0 %1016
    %1018 = vrot.lane.b32.xlu0 %v475, 32
    %v1019 = vpop.permute.xlu0 %1018
    %1020 = vrot.lane.b32.xlu0 %v480, 32
    %v1021 = vpop.permute.xlu0 %1020
    %1022 = vrot.lane.b32.xlu0 %v485, 32
    %v1023 = vpop.permute.xlu0 %1022
    %1024 = vrot.lane.b32.xlu0 %v490, 32
    %v1025 = vpop.permute.xlu0 %1024
    %1026 = vrot.lane.b32.xlu0 %v495, 32
    %v1027 = vpop.permute.xlu0 %1026
    %1028 = vrot.lane.b32.xlu0 %v500, 32
    %v1029 = vpop.permute.xlu0 %1028
    %1030 = vrot.lane.b32.xlu0 %v505, 32
    %v1031 = vpop.permute.xlu0 %1030
    %1032 = vrot.lane.b32.xlu0 %v510, 32
    %v1033 = vpop.permute.xlu0 %1032
    %1034 = vrot.lane.b32.xlu0 %v515, 32
    %v1035 = vpop.permute.xlu0 %1034
    %1068 = vrot.lane.b32.xlu0 %v675, 64
    %v1069 = vpop.permute.xlu0 %1068
    %1070 = vrot.lane.b32.xlu0 %v680, 64
    %v1071 = vpop.permute.xlu0 %1070
    %1072 = vrot.lane.b32.xlu0 %v685, 64
    %v1073 = vpop.permute.xlu0 %1072
    %1074 = vrot.lane.b32.xlu0 %v690, 64
    %v1075 = vpop.permute.xlu0 %1074
    %1076 = vrot.lane.b32.xlu0 %v695, 64
    %v1077 = vpop.permute.xlu0 %1076
    %1078 = vrot.lane.b32.xlu0 %v700, 64
    %v1079 = vpop.permute.xlu0 %1078
    %1080 = vrot.lane.b32.xlu0 %v705, 64
    %v1081 = vpop.permute.xlu0 %1080
    %1082 = vrot.lane.b32.xlu0 %v710, 64
    %v1083 = vpop.permute.xlu0 %1082
    %1084 = vrot.lane.b32.xlu0 %v715, 64
    %v1085 = vpop.permute.xlu0 %1084
    %1086 = vrot.lane.b32.xlu0 %v720, 64
    %v1087 = vpop.permute.xlu0 %1086
    %1088 = vrot.lane.b32.xlu0 %v725, 64
    %v1089 = vpop.permute.xlu0 %1088
    %1090 = vrot.lane.b32.xlu0 %v730, 64
    %v1091 = vpop.permute.xlu0 %1090
    %1092 = vrot.lane.b32.xlu0 %v735, 64
    %v1093 = vpop.permute.xlu0 %1092
    %1094 = vrot.lane.b32.xlu0 %v740, 64
    %v1095 = vpop.permute.xlu0 %1094
    %1096 = vrot.lane.b32.xlu0 %v745, 64
    %v1097 = vpop.permute.xlu0 %1096
    %1098 = vrot.lane.b32.xlu0 %v750, 64
    %v1099 = vpop.permute.xlu0 %1098
    %1132 = vrot.lane.b32.xlu0 %v910, 96
    %v1133 = vpop.permute.xlu0 %1132
    %1134 = vrot.lane.b32.xlu0 %v915, 96
    %v1135 = vpop.permute.xlu0 %1134
    %1136 = vrot.lane.b32.xlu0 %v920, 96
    %v1137 = vpop.permute.xlu0 %1136
    %1138 = vrot.lane.b32.xlu0 %v925, 96
    %v1139 = vpop.permute.xlu0 %1138
    %1140 = vrot.lane.b32.xlu0 %v930, 96
    %v1141 = vpop.permute.xlu0 %1140
    %1142 = vrot.lane.b32.xlu0 %v935, 96
    %v1143 = vpop.permute.xlu0 %1142
    %1144 = vrot.lane.b32.xlu0 %v940, 96
    %v1145 = vpop.permute.xlu0 %1144
    %1146 = vrot.lane.b32.xlu0 %v945, 96
    %v1147 = vpop.permute.xlu0 %1146
    %1148 = vrot.lane.b32.xlu0 %v950, 96
    %v1149 = vpop.permute.xlu0 %1148
    %1150 = vrot.lane.b32.xlu0 %v955, 96
    %v1151 = vpop.permute.xlu0 %1150
    %1152 = vrot.lane.b32.xlu0 %v960, 96
    %v1153 = vpop.permute.xlu0 %1152
    %1154 = vrot.lane.b32.xlu0 %v965, 96
    %v1155 = vpop.permute.xlu0 %1154
    %1156 = vrot.lane.b32.xlu0 %v970, 96
    %v1157 = vpop.permute.xlu0 %1156
    %1158 = vrot.lane.b32.xlu0 %v975, 96
    %v1159 = vpop.permute.xlu0 %1158
    %1160 = vrot.lane.b32.xlu0 %v980, 96
    %v1161 = vpop.permute.xlu0 %1160
    %1162 = vrot.lane.b32.xlu0 %v985, 96
    %v1163 = vpop.permute.xlu0 %1162
    %vm1180 = vcmask 261120
    %v1181 = vsel %vm1180, %v205, %v1005
    %v1182 = vsel %vm1180, %v210, %v1007
    %v1183 = vsel %vm1180, %v215, %v1009
    %v1184 = vsel %vm1180, %v220, %v1011
    %v1185 = vsel %vm1180, %v225, %v1013
    %v1186 = vsel %vm1180, %v230, %v1015
    %v1187 = vsel %vm1180, %v235, %v1017
    %v1188 = vsel %vm1180, %v240, %v1019
    %v1189 = vsel %vm1180, %v245, %v1021
    %v1190 = vsel %vm1180, %v250, %v1023
    %v1191 = vsel %vm1180, %v255, %v1025
    %v1192 = vsel %vm1180, %v260, %v1027
    %v1193 = vsel %vm1180, %v265, %v1029
    %v1194 = vsel %vm1180, %v270, %v1031
    %v1195 = vsel %vm1180, %v275, %v1033
    %v1196 = vsel %vm1180, %v280, %v1035
    %vm1197 = vcmask 523264
    %v1198 = vsel %vm1197, %v1181, %v1069
    %v1199 = vsel %vm1197, %v1182, %v1071
    %v1200 = vsel %vm1197, %v1183, %v1073
    %v1201 = vsel %vm1197, %v1184, %v1075
    %v1202 = vsel %vm1197, %v1185, %v1077
    %v1203 = vsel %vm1197, %v1186, %v1079
    %v1204 = vsel %vm1197, %v1187, %v1081
    %v1205 = vsel %vm1197, %v1188, %v1083
    %v1206 = vsel %vm1197, %v1189, %v1085
    %v1207 = vsel %vm1197, %v1190, %v1087
    %v1208 = vsel %vm1197, %v1191, %v1089
    %v1209 = vsel %vm1197, %v1192, %v1091
    %v1210 = vsel %vm1197, %v1193, %v1093
    %v1211 = vsel %vm1197, %v1194, %v1095
    %v1212 = vsel %vm1197, %v1195, %v1097
    %v1213 = vsel %vm1197, %v1196, %v1099
    %vm1214 = vcmask 785408
    %v1215 = vsel %vm1214, %v1198, %v1133
    %v1216 = vsel %vm1214, %v1199, %v1135
    %v1217 = vsel %vm1214, %v1200, %v1137
    %v1218 = vsel %vm1214, %v1201, %v1139
    %v1219 = vsel %vm1214, %v1202, %v1141
    %v1220 = vsel %vm1214, %v1203, %v1143
    %v1221 = vsel %vm1214, %v1204, %v1145
    %v1222 = vsel %vm1214, %v1205, %v1147
    %v1223 = vsel %vm1214, %v1206, %v1149
    %v1224 = vsel %vm1214, %v1207, %v1151
    %v1225 = vsel %vm1214, %v1208, %v1153
    %v1226 = vsel %vm1214, %v1209, %v1155
    %v1227 = vsel %vm1214, %v1210, %v1157
    %v1228 = vsel %vm1214, %v1211, %v1159
    %v1229 = vsel %vm1214, %v1212, %v1161
    %v1230 = vsel %vm1214, %v1213, %v1163
    %1231 = vst [vmem:[#allocation7] sm:$0xff] %v1215
    %1232 = vst [vmem:[#allocation7 + $0x8] sm:$0xff] %v1216
    %1233 = vst [vmem:[#allocation7 + $0x10] sm:$0xff] %v1217
    %1234 = vst [vmem:[#allocation7 + $0x18] sm:$0xff] %v1218
    %1235 = vst [vmem:[#allocation7 + $0x20] sm:$0xff] %v1219
    %1236 = vst [vmem:[#allocation7 + $0x28] sm:$0xff] %v1220
    %1237 = vst [vmem:[#allocation7 + $0x30] sm:$0xff] %v1221
    %1238 = vst [vmem:[#allocation7 + $0x38] sm:$0xff] %v1222
    %1239 = vst [vmem:[#allocation7 + $0x40] sm:$0xff] %v1223
    %1240 = vst [vmem:[#allocation7 + $0x48] sm:$0xff] %v1224
    %1241 = vst [vmem:[#allocation7 + $0x50] sm:$0xff] %v1225
    %1242 = vst [vmem:[#allocation7 + $0x58] sm:$0xff] %v1226
    %1243 = vst [vmem:[#allocation7 + $0x60] sm:$0xff] %v1227
    %1244 = vst [vmem:[#allocation7 + $0x68] sm:$0xff] %v1228
    %1245 = vst [vmem:[#allocation7 + $0x70] sm:$0xff] %v1229
    %1246 = vst [vmem:[#allocation7 + $0x78] sm:$0xff] %v1230
    // Predicated region
    $region18: #{tpu_custom_call.1} parent=1 // pred_check
      _
    $region19: #{tpu_custom_call.1} parent=1 // pred_check_branch
      %1248 = sbr.rel (0) target = $region21
    $region20: #{tpu_custom_call.1} parent=1 // pred_region
      %s1250 = ssub.s32 2048, 2048
      %1251 = vsyncadd [#allocation4], %s1250
      %s1252 = sshll.u32 [#allocation7], 4
      %s1253 = int_to_ptr.vmem [resolvable:$true] %s1252
      %1258 = dma.vmem_to_hbm [thread:$0]  %s1253, 2048, %s2, [#allocation4], 128, 128, 8
    $region21: #{tpu_custom_call.1} parent=1 // pred_fallthru
      _
    // Predicated region
    $region22: #{tpu_custom_call.1} parent=1 // pred_check
      _
    $region23: #{tpu_custom_call.1} parent=1 // pred_check_branch
      %1260 = sbr.rel (0) target = $region25
    $region24: #{tpu_custom_call.1} parent=1 // pred_region
      %1261 = dma.done [#allocation4], 2048
    $region25: #{tpu_custom_call.1} parent=1 // pred_fallthru
      _
    %1262 = vsyncpa [#allocation3], 1
    %1263 = vsyncpa [#allocation6], 1
    %1264 = vsyncpa [#allocation4], 1

</llo_original>
